<compile_context>
chip_gen: v5e
topology: v5e:2x2
jax: 0.10.0
libtpu: 0.0.40
codegen_flags: <defaults>
</compile_context>

<pallas_src>
import functools
import math

import jax
import jax.numpy as jnp
from jax.experimental import pallas as pl
from jax.experimental.pallas import tpu as pltpu


def _round_up(x, m):
    return ((x + m - 1) // m) * m


def _fused_mlp_kernel(x_ref, w_ref, b_ref, o_ref, act_ref, *, n_layers):
    # x_ref:   (tb, D)      padded input tile
    # w_ref:   (L, D, D)    zero-padded stacked weights (VMEM resident)
    # b_ref:   (L, 1, D)    zero-padded stacked biases (f32)
    # o_ref:   (tb, D)      padded output tile (lane-dense: D % 128 == 0)
    # act_ref: (tb, D) f32  activation scratch; intermediates never leave VMEM
    act_ref[...] = x_ref[...].astype(jnp.float32)
    for l in range(n_layers):            # static unrolled layer loop
        w_l = w_ref[l]                    # (D, D)
        lhs = act_ref[...]
        if w_l.dtype != lhs.dtype:        # bf16-compute path (v6e/v7x option)
            lhs = lhs.astype(w_l.dtype)
        y = jnp.dot(lhs, w_l, preferred_element_type=jnp.float32)
        y = y + b_ref[l]                  # (1, D) broadcast, f32
        if l != n_layers - 1:
            y = jnp.maximum(y, 0.0)       # ReLU; Dropout(p=0) == identity
            act_ref[...] = y
        else:
            o_ref[...] = y.astype(o_ref.dtype)


def mlp_forward_fused(x, params, *, tb=None, compute_dtype=None):
    """Fused MLP forward: (Linear -> ReLU)* -> Linear, all in one pallas_call.

    params: list of (w, b) with w of shape (in_f, out_f) so y = x @ w + b
            (equivalent to PyTorch y = x @ weight.T + bias).
    compute_dtype: optional dtype for the MXU operands (e.g. jnp.bfloat16 on
            v6e/v7x); accumulation, bias add and ReLU stay in f32.
    """
    B, in_f = x.shape
    L = len(params)
    out_f = params[-1][0].shape[1]

    # Common lane-dense feature width for every layer (padded, multiple of 128).
    dims = [in_f] + [w.shape[1] for (w, _) in params]
    D = max(_round_up(d, 128) for d in dims)

    # Batch tile: whole (sublane-rounded) batch if small -> grid of 1,
    # otherwise 256-row tiles (large enough to amortize ~0.35us/step overhead
    # and feed the MXU full-height operands).
    if tb is None:
        tb = _round_up(B, 8) if B <= 256 else 256
    B_pad = _round_up(B, tb)

    cdt = jnp.dtype(compute_dtype) if compute_dtype is not None else x.dtype

    # Zero-pad & stack weights/biases. Zero rows/cols guarantee padded feature
    # lanes stay exactly 0 through ReLU layers, so padding never leaks.
    w_stack = jnp.zeros((L, D, D), cdt)
    b_stack = jnp.zeros((L, 1, D), jnp.float32)
    for l, (w, b) in enumerate(params):
        fi, fo = w.shape
        w_stack = w_stack.at[l, :fi, :fo].set(w.astype(cdt))
        b_stack = b_stack.at[l, 0, :fo].set(b.astype(jnp.float32))

    # Zero-pad the input (extra rows are wasted compute, extra cols are inert).
    x_pad = jnp.zeros((B_pad, D), cdt).at[:B, :in_f].set(x.astype(cdt))

    # Advisory cost estimate for XLA scheduling.
    flops = 2 * B_pad * L * D * D
    bytes_accessed = (
        B_pad * D * jnp.dtype(cdt).itemsize          # x in
        + L * D * D * jnp.dtype(cdt).itemsize        # weights
        + L * D * 4                                  # biases
        + B_pad * D * jnp.dtype(x.dtype).itemsize    # out
    )

    kernel = functools.partial(_fused_mlp_kernel, n_layers=L)
    out_pad = pl.pallas_call(
        kernel,
        out_shape=jax.ShapeDtypeStruct((B_pad, D), x.dtype),
        grid_spec=pltpu.PrefetchScalarGridSpec(
            num_scalar_prefetch=0,
            grid=(B_pad // tb,),
            in_specs=[
                pl.BlockSpec((tb, D), lambda i: (i, 0)),        # x batch tile
                pl.BlockSpec((L, D, D), lambda i: (0, 0, 0)),   # all weights
                pl.BlockSpec((L, 1, D), lambda i: (0, 0, 0)),   # all biases
            ],
            out_specs=pl.BlockSpec((tb, D), lambda i: (i, 0)),
            scratch_shapes=[pltpu.VMEM((tb, D), jnp.float32)],  # activations
        ),
        compiler_params=pltpu.CompilerParams(
            dimension_semantics=("parallel",)),
        cost_estimate=pl.CostEstimate(
            flops=flops, transcendentals=0, bytes_accessed=bytes_accessed),
    )(x_pad, w_stack, b_stack)

    # Strip batch / feature padding (true output_size may be < 128).
    return out_pad[:B, :out_f]


def init_mlp_params(key, input_size, hidden_size, output_size,
                    n_hidden_layers=0, dtype=jnp.float32):
    """Deterministic init matching nn.Linear's U(-1/sqrt(fan_in), 1/sqrt(fan_in))."""
    sizes = [input_size] + [hidden_size] * (n_hidden_layers + 1) + [output_size]
    params = []
    for i in range(len(sizes) - 1):
        fan_in, fan_out = sizes[i], sizes[i + 1]
        key, kw, kb = jax.random.split(key, 3)
        bound = 1.0 / math.sqrt(fan_in)
        w = jax.random.uniform(kw, (fan_in, fan_out), dtype, -bound, bound)
        b = jax.random.uniform(kb, (fan_out,), dtype, -bound, bound)
        params.append((w, b))
    return params


if __name__ == "__main__":
    # Small shapes consistent with the module: batch=16, input=32, hidden=64,
    # output=8, one extra hidden layer, drop_rate=0.
    B, input_size, hidden_size, output_size = 16, 32, 64, 8
    n_hidden_layers = 1

    key = jax.random.PRNGKey(0)
    kx, kp = jax.random.split(key)
    x = jax.random.normal(kx, (B, input_size), jnp.float32)
    params = init_mlp_params(kp, input_size, hidden_size, output_size,
                             n_hidden_layers=n_hidden_layers)

    out = jax.jit(mlp_forward_fused)(x, params)
    jax.block_until_ready(out)

    # Sanity check against plain-JAX reference (f32 compute path).
    ref = x
    for i, (w, b) in enumerate(params):
        ref = ref @ w + b
        if i != len(params) - 1:
            ref = jnp.maximum(ref, 0.0)
    assert out.shape == (B, output_size)
    assert jnp.allclose(out, ref, atol=1e-5, rtol=1e-5)

    print("KERNEL_OK")
</pallas_src>

<mosaic_0001>
module attributes {stable_mosaic.version = 11 : i64} {
  func.func @_fused_mlp_kernel(%arg0: i32, %arg1: memref<16x128xf32, #tpu.memory_space<vmem>>, %arg2: memref<3x128x128xf32, #tpu.memory_space<vmem>>, %arg3: memref<3x1x128xf32, #tpu.memory_space<vmem>>, %arg4: memref<16x128xf32, #tpu.memory_space<vmem>>, %arg5: memref<16x128xf32, #tpu.memory_space<vmem>>) attributes {dimension_semantics = [#tpu.dimension_semantics<parallel>], iteration_bounds = array<i64: 1>, scalar_prefetch = 0 : i64, scratch_operands = 1 : i64, tpu.core_type = #tpu.core_type<tc>, window_params = [{transform_indices = @transform_0, window_bounds = array<i64: 16, 128>}, {pipeline_mode = #tpu.pipeline_mode<synchronous>, transform_indices = @transform_1, window_bounds = array<i64: 3, 128, 128>}, {pipeline_mode = #tpu.pipeline_mode<synchronous>, transform_indices = @transform_2, window_bounds = array<i64: 3, 1, 128>}, {transform_indices = @transform_3, window_bounds = array<i64: 16, 128>}]} {
    %c0 = arith.constant 0 : index
    %c0_0 = arith.constant 0 : index
    %0 = vector.load %arg1[%c0, %c0_0] : memref<16x128xf32, #tpu.memory_space<vmem>>, vector<16x128xf32>
    %c0_1 = arith.constant 0 : index
    %c0_2 = arith.constant 0 : index
    %1 = vector.load %arg5[%c0_1, %c0_2] : memref<16x128xf32, #tpu.memory_space<vmem>>, vector<16x128xf32>
    tpu.vector_store %arg5[%c0_1, %c0_2], %0 {strides = array<i32>} : memref<16x128xf32, #tpu.memory_space<vmem>>, vector<16x128xf32>,
    %c0_3 = arith.constant 0 : index
    %c0_4 = arith.constant 0 : index
    %c0_5 = arith.constant 0 : index
    %2 = vector.load %arg2[%c0_3, %c0_4, %c0_5] : memref<3x128x128xf32, #tpu.memory_space<vmem>>, vector<1x128x128xf32>
    %3 = vector.shape_cast %2 : vector<1x128x128xf32> to vector<128x128xf32>
    %c0_6 = arith.constant 0 : index
    %c0_7 = arith.constant 0 : index
    %4 = vector.load %arg5[%c0_6, %c0_7] : memref<16x128xf32, #tpu.memory_space<vmem>>, vector<16x128xf32>
    %cst = arith.constant dense<0.000000e+00> : vector<16x128xf32>
    %5 = tpu.matmul %4, %3, %cst {dimension_numbers = #tpu.dot_dimension_numbers<[1], [0], [0], [1], [0, 0, 1, 1], [], []>} : vector<16x128xf32>, vector<128x128xf32>, vector<16x128xf32> -> vector<16x128xf32>
    %c0_8 = arith.constant 0 : index
    %c0_9 = arith.constant 0 : index
    %c0_10 = arith.constant 0 : index
    %6 = vector.load %arg3[%c0_8, %c0_9, %c0_10] : memref<3x1x128xf32, #tpu.memory_space<vmem>>, vector<1x1x128xf32>
    %7 = vector.shape_cast %6 : vector<1x1x128xf32> to vector<1x128xf32>
    %8 = vector.broadcast %7 : vector<1x128xf32> to vector<16x128xf32>
    %9 = arith.addf %5, %8 : vector<16x128xf32>
    %cst_11 = arith.constant 0.000000e+00 : f32
    %10 = vector.broadcast %cst_11 : f32 to vector<16x128xf32>
    %11 = arith.maximumf %9, %10 : vector<16x128xf32>
    %c0_12 = arith.constant 0 : index
    %c0_13 = arith.constant 0 : index
    %12 = vector.load %arg5[%c0_12, %c0_13] : memref<16x128xf32, #tpu.memory_space<vmem>>, vector<16x128xf32>
    tpu.vector_store %arg5[%c0_12, %c0_13], %11 {strides = array<i32>} : memref<16x128xf32, #tpu.memory_space<vmem>>, vector<16x128xf32>,
    %c1 = arith.constant 1 : index
    %c0_14 = arith.constant 0 : index
    %c0_15 = arith.constant 0 : index
    %13 = vector.load %arg2[%c1, %c0_14, %c0_15] : memref<3x128x128xf32, #tpu.memory_space<vmem>>, vector<1x128x128xf32>
    %14 = vector.shape_cast %13 : vector<1x128x128xf32> to vector<128x128xf32>
    %c0_16 = arith.constant 0 : index
    %c0_17 = arith.constant 0 : index
    %15 = vector.load %arg5[%c0_16, %c0_17] : memref<16x128xf32, #tpu.memory_space<vmem>>, vector<16x128xf32>
    %cst_18 = arith.constant dense<0.000000e+00> : vector<16x128xf32>
    %16 = tpu.matmul %15, %14, %cst_18 {dimension_numbers = #tpu.dot_dimension_numbers<[1], [0], [0], [1], [0, 0, 1, 1], [], []>} : vector<16x128xf32>, vector<128x128xf32>, vector<16x128xf32> -> vector<16x128xf32>
    %c1_19 = arith.constant 1 : index
    %c0_20 = arith.constant 0 : index
    %c0_21 = arith.constant 0 : index
    %17 = vector.load %arg3[%c1_19, %c0_20, %c0_21] : memref<3x1x128xf32, #tpu.memory_space<vmem>>, vector<1x1x128xf32>
    %18 = vector.shape_cast %17 : vector<1x1x128xf32> to vector<1x128xf32>
    %19 = vector.broadcast %18 : vector<1x128xf32> to vector<16x128xf32>
    %20 = arith.addf %16, %19 : vector<16x128xf32>
    %cst_22 = arith.constant 0.000000e+00 : f32
    %21 = vector.broadcast %cst_22 : f32 to vector<16x128xf32>
    %22 = arith.maximumf %20, %21 : vector<16x128xf32>
    %c0_23 = arith.constant 0 : index
    %c0_24 = arith.constant 0 : index
    %23 = vector.load %arg5[%c0_23, %c0_24] : memref<16x128xf32, #tpu.memory_space<vmem>>, vector<16x128xf32>
    tpu.vector_store %arg5[%c0_23, %c0_24], %22 {strides = array<i32>} : memref<16x128xf32, #tpu.memory_space<vmem>>, vector<16x128xf32>,
    %c2 = arith.constant 2 : index
    %c0_25 = arith.constant 0 : index
    %c0_26 = arith.constant 0 : index
    %24 = vector.load %arg2[%c2, %c0_25, %c0_26] : memref<3x128x128xf32, #tpu.memory_space<vmem>>, vector<1x128x128xf32>
    %25 = vector.shape_cast %24 : vector<1x128x128xf32> to vector<128x128xf32>
    %c0_27 = arith.constant 0 : index
    %c0_28 = arith.constant 0 : index
    %26 = vector.load %arg5[%c0_27, %c0_28] : memref<16x128xf32, #tpu.memory_space<vmem>>, vector<16x128xf32>
    %cst_29 = arith.constant dense<0.000000e+00> : vector<16x128xf32>
    %27 = tpu.matmul %26, %25, %cst_29 {dimension_numbers = #tpu.dot_dimension_numbers<[1], [0], [0], [1], [0, 0, 1, 1], [], []>} : vector<16x128xf32>, vector<128x128xf32>, vector<16x128xf32> -> vector<16x128xf32>
    %c2_30 = arith.constant 2 : index
    %c0_31 = arith.constant 0 : index
    %c0_32 = arith.constant 0 : index
    %28 = vector.load %arg3[%c2_30, %c0_31, %c0_32] : memref<3x1x128xf32, #tpu.memory_space<vmem>>, vector<1x1x128xf32>
    %29 = vector.shape_cast %28 : vector<1x1x128xf32> to vector<1x128xf32>
    %30 = vector.broadcast %29 : vector<1x128xf32> to vector<16x128xf32>
    %31 = arith.addf %27, %30 : vector<16x128xf32>
    %c0_33 = arith.constant 0 : index
    %c0_34 = arith.constant 0 : index
    %32 = vector.load %arg4[%c0_33, %c0_34] : memref<16x128xf32, #tpu.memory_space<vmem>>, vector<16x128xf32>
    tpu.vector_store %arg4[%c0_33, %c0_34], %31 {strides = array<i32>} : memref<16x128xf32, #tpu.memory_space<vmem>>, vector<16x128xf32>,
    return
  }
  func.func @transform_0(%arg0: i32) -> (i32, i32) {
    %c0_i32 = arith.constant 0 : i32
    %c0_i32_0 = arith.constant 0 : i32
    return %arg0, %c0_i32 : i32, i32
  }
  func.func @transform_1(%arg0: i32) -> (i32, i32, i32) {
    %c0_i32 = arith.constant 0 : i32
    %c0_i32_0 = arith.constant 0 : i32
    %c0_i32_1 = arith.constant 0 : i32
    %c0_i32_2 = arith.constant 0 : i32
    return %c0_i32, %c0_i32_0, %c0_i32_1 : i32, i32, i32
  }
  func.func @transform_2(%arg0: i32) -> (i32, i32, i32) {
    %c0_i32 = arith.constant 0 : i32
    %c0_i32_0 = arith.constant 0 : i32
    %c0_i32_1 = arith.constant 0 : i32
    %c0_i32_2 = arith.constant 0 : i32
    return %c0_i32, %c0_i32_0, %c0_i32_1 : i32, i32, i32
  }
  func.func @transform_3(%arg0: i32) -> (i32, i32) {
    %c0_i32 = arith.constant 0 : i32
    %c0_i32_0 = arith.constant 0 : i32
    return %arg0, %c0_i32 : i32, i32
  }
}

</mosaic_0001>

<llo_original>
// kernel: mlp_forward_fused.1
$region0: #{mlp_forward_fused.1}
  #allocation0 [shape = 'u32[]', space=smem, size = 0x4, offset = 0x4, fixed_abs, tag = 'smem constant byte address 0x4 - core index']
  #allocation1 [shape = 'u32[72,128]{1,0:T(1,128)}', space=vmem, size = 0x9000, scoped, tag = 'internal scratch']
  #allocation2 [shape = 'f32[16,128]{1,0:T(8,128)}', space=vmem, size = 0x2000, scoped, tag = 'scratch operand']
  %s0 = inlined_call_operand.vmem [shape: f32[16,128], index: 0, kind: input, shape index: {}]
  %s1 = inlined_call_operand.vmem [shape: f32[3,128,128], index: 1, kind: input, shape index: {}]
  %s2 = inlined_call_operand.vmem [shape: f32[3,1,128], index: 2, kind: input, shape index: {}]
  %s3 = inlined_call_operand.vmem [shape: f32[16,128], index: 3, kind: output, shape index: {}]
  %s4 = sld [smem:[#allocation0]]
  $region22: #{mlp_forward_fused.1} parent=0
    _
  %s6 = ssub.s32 1, %s4
  %s7 = scalar_select 0, %s6, %s4
  // Predicated region
  $region2: #{mlp_forward_fused.1} parent=0 // pred_check
    _
  $region3: #{mlp_forward_fused.1} parent=0 // pred_check_branch
    %9 = sbr.rel (0) target = $region5
  $region4: #{mlp_forward_fused.1} parent=0 // pred_region
    _
  $region5: #{mlp_forward_fused.1} parent=0 // pred_fallthru
    _
  // Predicated region
  $region6: #{mlp_forward_fused.1} parent=0 // pred_check
    _
  $region7: #{mlp_forward_fused.1} parent=0 // pred_check_branch
    %11 = sbr.rel (0) target = $region9
  $region8: #{mlp_forward_fused.1} parent=0 // pred_region
    _
  $region9: #{mlp_forward_fused.1} parent=0 // pred_fallthru
    _
  // Predicated region
  $region10: #{mlp_forward_fused.1} parent=0 // pred_check
    _
  $region11: #{mlp_forward_fused.1} parent=0 // pred_check_branch
    %13 = sbr.rel (0) target = $region13
  $region12: #{mlp_forward_fused.1} parent=0 // pred_region
    _
  $region13: #{mlp_forward_fused.1} parent=0 // pred_fallthru
    _
  %v14 = vld [vmem:[%s0] sm:$0xff]
  %v15 = vld [vmem:[%s0 + $0x8] sm:$0xff]
  %16 = vst [vmem:[#allocation2] sm:$0xff] %v14
  %17 = vst [vmem:[#allocation2 + $0x8] sm:$0xff] %v15
  %v18 = vld [vmem:[%s1] sm:$0xff]
  %v19 = vld [vmem:[%s1 + $0x8] sm:$0xff]
  %v20 = vld [vmem:[%s1 + $0x10] sm:$0xff]
  %v21 = vld [vmem:[%s1 + $0x18] sm:$0xff]
  %v22 = vld [vmem:[%s1 + $0x20] sm:$0xff]
  %v23 = vld [vmem:[%s1 + $0x28] sm:$0xff]
  %v24 = vld [vmem:[%s1 + $0x30] sm:$0xff]
  %v25 = vld [vmem:[%s1 + $0x38] sm:$0xff]
  %v26 = vld [vmem:[%s1 + $0x40] sm:$0xff]
  %v27 = vld [vmem:[%s1 + $0x48] sm:$0xff]
  %v28 = vld [vmem:[%s1 + $0x50] sm:$0xff]
  %v29 = vld [vmem:[%s1 + $0x58] sm:$0xff]
  %v30 = vld [vmem:[%s1 + $0x60] sm:$0xff]
  %v31 = vld [vmem:[%s1 + $0x68] sm:$0xff]
  %v32 = vld [vmem:[%s1 + $0x70] sm:$0xff]
  %v33 = vld [vmem:[%s1 + $0x78] sm:$0xff]
  %v34 = vld [vmem:[#allocation2] sm:$0xff]
  %v35 = vld [vmem:[#allocation2 + $0x8] sm:$0xff]
  %v36 = vld [vmem:[%s2] sm:$0x1]
  %v38 = vperm.slane %v36, 0
  %40 = vmatpush.msra.mxu0 %v33
  %41 = vmatpush.msra.mxu0 %v32
  %42 = vmatpush.msra.mxu0 %v31
  %43 = vmatpush.msra.mxu0 %v30
  %44 = vmatpush.msra.mxu0 %v29
  %45 = vmatpush.msra.mxu0 %v28
  %46 = vmatpush.msra.mxu0 %v27
  %47 = vmatpush.msra.mxu0 %v26
  %48 = vmatpush.msra.mxu0 %v25
  %49 = vmatpush.msra.mxu0 %v24
  %50 = vmatpush.msra.mxu0 %v23
  %51 = vmatpush.msra.mxu0 %v22
  %52 = vmatpush.msra.mxu0 %v21
  %53 = vmatpush.msra.mxu0 %v20
  %54 = vmatpush.msra.mxu0 %v19
  %55 = vmatpush.msra.mxu0 %v18
  %56 = vmatmul.f32.gmra.mxu0 %v34
  %v57 = vpop.f32.mrf.mxu0
  %v58 = vadd.f32 %v38, %v57
  %59 = vmatmul.f32.gmra.mxu0 %v35
  %v60 = vpop.f32.mrf.mxu0
  %v61 = vadd.f32 %v38, %v60
  %62 = vdwg.mxu0
  %v63 = vmax.f32 %v58, 0.0
  %v64 = vmax.f32 %v61, 0.0
  %65 = vst [vmem:[#allocation2] sm:$0xff] %v63
  %66 = vst [vmem:[#allocation2 + $0x8] sm:$0xff] %v64
  %s67 = scalar_lea.vmem %s1, 128
  %v68 = vld [vmem:[%s67] sm:$0xff]
  %v69 = vld [vmem:[%s67 + $0x8] sm:$0xff]
  %v70 = vld [vmem:[%s67 + $0x10] sm:$0xff]
  %v71 = vld [vmem:[%s67 + $0x18] sm:$0xff]
  %v72 = vld [vmem:[%s67 + $0x20] sm:$0xff]
  %v73 = vld [vmem:[%s67 + $0x28] sm:$0xff]
  %v74 = vld [vmem:[%s67 + $0x30] sm:$0xff]
  %v75 = vld [vmem:[%s67 + $0x38] sm:$0xff]
  %v76 = vld [vmem:[%s67 + $0x40] sm:$0xff]
  %v77 = vld [vmem:[%s67 + $0x48] sm:$0xff]
  %v78 = vld [vmem:[%s67 + $0x50] sm:$0xff]
  %v79 = vld [vmem:[%s67 + $0x58] sm:$0xff]
  %v80 = vld [vmem:[%s67 + $0x60] sm:$0xff]
  %v81 = vld [vmem:[%s67 + $0x68] sm:$0xff]
  %v82 = vld [vmem:[%s67 + $0x70] sm:$0xff]
  %v83 = vld [vmem:[%s67 + $0x78] sm:$0xff]
  %v84 = vld [vmem:[#allocation2] sm:$0xff]
  %v85 = vld [vmem:[#allocation2 + $0x8] sm:$0xff]
  %s86 = scalar_lea.vmem %s2, 1
  %v87 = vld [vmem:[%s86] sm:$0x1]
  %v89 = vperm.slane %v87, 0
  %91 = vmatpush.msra.mxu0 %v83
  %92 = vmatpush.msra.mxu0 %v82
  %93 = vmatpush.msra.mxu0 %v81
  %94 = vmatpush.msra.mxu0 %v80
  %95 = vmatpush.msra.mxu0 %v79
  %96 = vmatpush.msra.mxu0 %v78
  %97 = vmatpush.msra.mxu0 %v77
  %98 = vmatpush.msra.mxu0 %v76
  %99 = vmatpush.msra.mxu0 %v75
  %100 = vmatpush.msra.mxu0 %v74
  %101 = vmatpush.msra.mxu0 %v73
  %102 = vmatpush.msra.mxu0 %v72
  %103 = vmatpush.msra.mxu0 %v71
  %104 = vmatpush.msra.mxu0 %v70
  %105 = vmatpush.msra.mxu0 %v69
  %106 = vmatpush.msra.mxu0 %v68
  %107 = vmatmul.f32.gmra.mxu0 %v84
  %v108 = vpop.f32.mrf.mxu0
  %v109 = vadd.f32 %v89, %v108
  %110 = vmatmul.f32.gmra.mxu0 %v85
  %v111 = vpop.f32.mrf.mxu0
  %v112 = vadd.f32 %v89, %v111
  %113 = vdwg.mxu0
  %v114 = vmax.f32 %v109, 0.0
  %v115 = vmax.f32 %v112, 0.0
  %116 = vst [vmem:[#allocation2] sm:$0xff] %v114
  %117 = vst [vmem:[#allocation2 + $0x8] sm:$0xff] %v115
  %s118 = scalar_lea.vmem %s1, 256
  %v119 = vld [vmem:[%s118] sm:$0xff]
  %v120 = vld [vmem:[%s118 + $0x8] sm:$0xff]
  %v121 = vld [vmem:[%s118 + $0x10] sm:$0xff]
  %v122 = vld [vmem:[%s118 + $0x18] sm:$0xff]
  %v123 = vld [vmem:[%s118 + $0x20] sm:$0xff]
  %v124 = vld [vmem:[%s118 + $0x28] sm:$0xff]
  %v125 = vld [vmem:[%s118 + $0x30] sm:$0xff]
  %v126 = vld [vmem:[%s118 + $0x38] sm:$0xff]
  %v127 = vld [vmem:[%s118 + $0x40] sm:$0xff]
  %v128 = vld [vmem:[%s118 + $0x48] sm:$0xff]
  %v129 = vld [vmem:[%s118 + $0x50] sm:$0xff]
  %v130 = vld [vmem:[%s118 + $0x58] sm:$0xff]
  %v131 = vld [vmem:[%s118 + $0x60] sm:$0xff]
  %v132 = vld [vmem:[%s118 + $0x68] sm:$0xff]
  %v133 = vld [vmem:[%s118 + $0x70] sm:$0xff]
  %v134 = vld [vmem:[%s118 + $0x78] sm:$0xff]
  %v135 = vld [vmem:[#allocation2] sm:$0xff]
  %v136 = vld [vmem:[#allocation2 + $0x8] sm:$0xff]
  %s137 = scalar_lea.vmem %s2, 2
  %v138 = vld [vmem:[%s137] sm:$0x1]
  %v140 = vperm.slane %v138, 0
  %142 = vmatpush.msra.mxu0 %v134
  %143 = vmatpush.msra.mxu0 %v133
  %144 = vmatpush.msra.mxu0 %v132
  %145 = vmatpush.msra.mxu0 %v131
  %146 = vmatpush.msra.mxu0 %v130
  %147 = vmatpush.msra.mxu0 %v129
  %148 = vmatpush.msra.mxu0 %v128
  %149 = vmatpush.msra.mxu0 %v127
  %150 = vmatpush.msra.mxu0 %v126
  %151 = vmatpush.msra.mxu0 %v125
  %152 = vmatpush.msra.mxu0 %v124
  %153 = vmatpush.msra.mxu0 %v123
  %154 = vmatpush.msra.mxu0 %v122
  %155 = vmatpush.msra.mxu0 %v121
  %156 = vmatpush.msra.mxu0 %v120
  %157 = vmatpush.msra.mxu0 %v119
  %158 = vmatmul.f32.gmra.mxu0 %v135
  %v159 = vpop.f32.mrf.mxu0
  %v160 = vadd.f32 %v140, %v159
  %161 = vmatmul.f32.gmra.mxu0 %v136
  %v162 = vpop.f32.mrf.mxu0
  %v163 = vadd.f32 %v140, %v162
  %164 = vdwg.mxu0
  %165 = vst [vmem:[%s3] sm:$0xff] %v160
  %166 = vst [vmem:[%s3 + $0x8] sm:$0xff] %v163
  // Predicated region
  $region14: #{mlp_forward_fused.1} parent=0 // pred_check
    _
  $region15: #{mlp_forward_fused.1} parent=0 // pred_check_branch
    %168 = sbr.rel (0) target = $region17
  $region16: #{mlp_forward_fused.1} parent=0 // pred_region
    _
  $region17: #{mlp_forward_fused.1} parent=0 // pred_fallthru
    _
  // Predicated region
  $region18: #{mlp_forward_fused.1} parent=0 // pred_check
    _
  $region19: #{mlp_forward_fused.1} parent=0 // pred_check_branch
    %170 = sbr.rel (0) target = $region21
  $region20: #{mlp_forward_fused.1} parent=0 // pred_region
    _
  $region21: #{mlp_forward_fused.1} parent=0 // pred_fallthru
    _

</llo_original>
